<compile_context>
chip_gen: v6e
topology: v6e:2x2x1
jax: 0.10.0
libtpu: 0.0.40
codegen_flags: <defaults>
</compile_context>

<pallas_src>
from functools import partial

import jax
import jax.numpy as jnp
from jax.experimental import pallas as pl
from jax.experimental.pallas import tpu as pltpu


# ------------------------------------------------------------------ kernel ---

def _pool_rows(x, *, k, w_in, wo, out_dtype):
    """Max-pool one 2-D block.

    x: (rows, k * w_in) value; each row holds the k input image-rows of one
       output row concatenated along lanes: [row0 | row1 | ... | row_{k-1}].
    Returns (rows, wo).
    """
    # H-pooling: the k window rows are contiguous lane chunks -> plain static
    # slices + elementwise maxima (pure VPU, no cross-lane traffic).
    h = x[:, 0:w_in]
    for dh in range(1, k):
        h = jnp.maximum(h, x[:, dh * w_in:(dh + 1) * w_in])

    # W-pooling: align the k lane taps with shifted slices so that lane wo*k
    # holds the window max, then compact every k-th lane with a 0/1 selection
    # matrix on the (otherwise idle) MXU.  Exact: each output = 1*value + 0*rest.
    wc = (wo - 1) * k + 1
    m = h[:, 0:wc]
    for dw in range(1, k):
        m = jnp.maximum(m, h[:, dw:dw + wc])

    row_i = jax.lax.broadcasted_iota(jnp.int32, (wc, wo), 0)
    col_i = jax.lax.broadcasted_iota(jnp.int32, (wc, wo), 1)
    sel = (row_i == col_i * k).astype(m.dtype)
    # NOTE: a +-inf / NaN in a *non-selected* lane would leak through 0*x in the
    # compaction dot; pooled activations are finite so this matches MaxPool2d.
    out = jnp.dot(m, sel, preferred_element_type=jnp.float32)
    return out.astype(out_dtype)


def _maxpool_kernel(x_ref, o_ref, *, k, w_in, wo):
    o_ref[...] = _pool_rows(x_ref[...], k=k, w_in=w_in, wo=wo,
                            out_dtype=o_ref.dtype)


def _maxpool_kernel_pair(x_ref, y_ref, ox_ref, oy_ref, *, k, w_in, wo):
    ox_ref[...] = _pool_rows(x_ref[...], k=k, w_in=w_in, wo=wo,
                             out_dtype=ox_ref.dtype)
    oy_ref[...] = _pool_rows(y_ref[...], k=k, w_in=w_in, wo=wo,
                             out_dtype=oy_ref.dtype)


# ----------------------------------------------------------------- tiling ----

# ~5 MiB input block: 2x-in + 2x-out double buffering stays inside the 16 MiB
# v5e default scoped VMEM without flags; per-step DMA (>= 1.5 us even at the
# v7x 3.2 TB/s roofline) comfortably amortizes the ~0.35 us per-step overhead.
_SINGLE_BUDGET = 5 << 20
_PAIR_BUDGET = _SINGLE_BUDGET // 2       # two tensors live per grid step


def _divisors(n):
    small, large = [], []
    i = 1
    while i * i <= n:
        if n % i == 0:
            small.append(i)
            if i != n // i:
                large.append(n // i)
        i += 1
    return sorted(small + large, reverse=True)


def _choose_row_block(n_rows, bytes_per_row, budget_bytes, sub_mult):
    """Largest divisor of n_rows that (a) is a multiple of `sub_mult` (sublane
    tile) or the full dim, (b) fits the VMEM budget, preferring >= 2 grid steps
    so the 'parallel' axis can be sharded across both v7x TensorCores."""
    fitting = []
    for d in _divisors(n_rows):
        if d != n_rows and d % sub_mult != 0:
            continue
        if d * bytes_per_row <= budget_bytes:
            fitting.append(d)
    if not fitting:
        cands = [d for d in _divisors(n_rows) if d % sub_mult == 0]
        return min(cands) if cands else n_rows
    multi = [d for d in fitting if n_rows // d >= 2]
    return max(multi) if multi else max(fitting)


def _row_view(x, k):
    """(N, C, H, W) -> 2-D row view (N*C*Ho, k*k*Wo), floor-div cropping."""
    N, C, H, W = x.shape
    Ho, Wo = H // k, W // k
    if H != Ho * k or W != Wo * k:
        # PyTorch MaxPool2d floor semantics: silently drop remainder rows/cols.
        x = x[:, :, :Ho * k, :Wo * k]
    x2 = x.reshape(N * C * Ho, k * Wo * k)   # pure row-major reshape (bitcast)
    return x2, (N, C, Ho, Wo)


def _pool_call(rows, k, wo, budget_bytes):
    """Pool 1 or 2 same-shape 2-D row views with a single pallas_call."""
    R, lanes_in = rows[0].shape
    dtype = rows[0].dtype
    itemsize = jnp.dtype(dtype).itemsize
    sub_mult = max(8, 32 // itemsize)        # 8 for f32, 16 for bf16, ...
    r_blk = _choose_row_block(R, lanes_in * itemsize, budget_bytes, sub_mult)
    grid = (R // r_blk,)

    n = len(rows)
    kern = _maxpool_kernel if n == 1 else _maxpool_kernel_pair
    in_spec = pl.BlockSpec((r_blk, lanes_in), lambda i: (i, 0))
    out_spec = pl.BlockSpec((r_blk, wo), lambda i: (i, 0))
    wc = (wo - 1) * k + 1

    cost = pl.CostEstimate(
        flops=int(n * R * ((k * k - 1) * wo + 2 * wc * wo)),
        transcendentals=0,
        bytes_accessed=int(n * R * (lanes_in + wo) * itemsize),
    )

    outs = pl.pallas_call(
        partial(kern, k=k, w_in=wo * k, wo=wo),
        out_shape=tuple(jax.ShapeDtypeStruct((R, wo), dtype) for _ in range(n)),
        grid_spec=pl.GridSpec(
            grid=grid,
            in_specs=[in_spec] * n,
            out_specs=tuple([out_spec] * n),
        ),
        compiler_params=pltpu.CompilerParams(
            dimension_semantics=("parallel",)),
        cost_estimate=cost,
    )(*rows)
    return list(outs)


# --------------------------------------------------------------- wrappers ----

@partial(jax.jit, static_argnames=("k_pool",))
def maxpool2d_pallas(x, k_pool):
    """MaxPool2d(kernel=k_pool, stride=k_pool) on an NCHW array via Pallas."""
    if k_pool == 1:
        return x
    x2, (N, C, Ho, Wo) = _row_view(x, k_pool)
    (o2,) = _pool_call([x2], k_pool, Wo, budget_bytes=_SINGLE_BUDGET)
    return o2.reshape(N, C, Ho, Wo)


@partial(jax.jit, static_argnames=("k_pool",))
def maxpool2d_pallas_pair(x, y, k_pool):
    """Pool two same-shape NCHW arrays with ONE fused pallas_call."""
    if k_pool == 1:
        return x, y
    x2, (Nx, Cx, Hox, Wox) = _row_view(x, k_pool)
    y2, (Ny, Cy, Hoy, Woy) = _row_view(y, k_pool)
    ox2, oy2 = _pool_call([x2, y2], k_pool, Wox, budget_bytes=_PAIR_BUDGET)
    return (ox2.reshape(Nx, Cx, Hox, Wox), oy2.reshape(Ny, Cy, Hoy, Woy))


class DSTMaxPool2dBlock:
    """JAX/Pallas port of the PyTorch DSTMaxPool2dBlock forward pass."""

    def __init__(self, k_pool, dsnn=False):
        self.k_pool = k_pool
        self.dsnn = dsnn
        self.training = True  # mimic nn.Module default mode

    def __call__(self, x):
        if isinstance(x, tuple):
            x, y = x
            if (y is not None and tuple(y.shape) == tuple(x.shape)
                    and y.dtype == x.dtype):
                x, y = maxpool2d_pallas_pair(x, y, k_pool=self.k_pool)
            else:
                xp = maxpool2d_pallas(x, k_pool=self.k_pool)
                if y is not None:
                    y = maxpool2d_pallas(y, k_pool=self.k_pool)
                elif self.training or self.dsnn:
                    y = xp
                x = xp
            return (x, y)
        return maxpool2d_pallas(x, k_pool=self.k_pool)


# ------------------------------------------------------------------- test ----

def _reference_maxpool(x, k):
    N, C, H, W = x.shape
    Ho, Wo = H // k, W // k
    xr = x[:, :, :Ho * k, :Wo * k].reshape(N, C, Ho, k, Wo, k)
    return xr.max(axis=(3, 5))


if __name__ == "__main__":
    key = jax.random.PRNGKey(0)
    N, C, H, W = 2, 4, 16, 16
    k_pool = 2

    x = jax.random.normal(key, (N, C, H, W), dtype=jnp.float32)
    block = DSTMaxPool2dBlock(k_pool, dsnn=False)

    # plain-tensor path
    out = jax.block_until_ready(block(x))
    ref = _reference_maxpool(x, k_pool)
    assert out.shape == (N, C, H // k_pool, W // k_pool)
    assert jnp.allclose(out, ref), "maxpool mismatch vs reference"

    # tuple path with y = None (training -> y becomes pooled x)
    ox, oy = block((x, None))
    jax.block_until_ready((ox, oy))
    assert jnp.allclose(ox, ref) and jnp.allclose(oy, ref)

    # tuple path with a real y -> one fused pallas_call for x and y
    y = jax.random.normal(jax.random.PRNGKey(1), (N, C, H, W), dtype=jnp.float32)
    ox2, oy2 = block((x, y))
    jax.block_until_ready((ox2, oy2))
    assert jnp.allclose(ox2, ref)
    assert jnp.allclose(oy2, _reference_maxpool(y, k_pool))

    # non-divisible spatial dims (PyTorch floor semantics)
    x_odd = jax.random.normal(jax.random.PRNGKey(2), (2, 3, 9, 9),
                              dtype=jnp.float32)
    o_odd = jax.block_until_ready(maxpool2d_pallas(x_odd, k_pool=2))
    assert jnp.allclose(o_odd, _reference_maxpool(x_odd, 2))

    # larger pooling kernel
    x4 = jax.random.normal(jax.random.PRNGKey(3), (2, 4, 16, 16),
                           dtype=jnp.float32)
    o4 = jax.block_until_ready(maxpool2d_pallas(x4, k_pool=4))
    assert jnp.allclose(o4, _reference_maxpool(x4, 4))

    print("KERNEL_OK")
</pallas_src>

<mosaic_0001>
module attributes {stable_mosaic.version = 11 : i64} {
  func.func @_maxpool_kernel(%arg0: i32, %arg1: memref<32x32xf32, #tpu.memory_space<vmem>>, %arg2: memref<32x8xf32, #tpu.memory_space<vmem>>) attributes {dimension_semantics = [#tpu.dimension_semantics<parallel>], iteration_bounds = array<i64: 2>, scalar_prefetch = 0 : i64, scratch_operands = 0 : i64, tpu.core_type = #tpu.core_type<tc>, window_params = [{transform_indices = @transform_0, window_bounds = array<i64: 32, 32>}, {transform_indices = @transform_1, window_bounds = array<i64: 32, 8>}]} {
    %c0 = arith.constant 0 : index
    %c0_0 = arith.constant 0 : index
    %0 = vector.load %arg1[%c0, %c0_0] : memref<32x32xf32, #tpu.memory_space<vmem>>, vector<32x32xf32>
    %1 = vector.extract_strided_slice %0 {offsets = [0, 0], sizes = [32, 16], strides = [1, 1]} : vector<32x32xf32> to vector<32x16xf32>
    %2 = vector.extract_strided_slice %0 {offsets = [0, 16], sizes = [32, 16], strides = [1, 1]} : vector<32x32xf32> to vector<32x16xf32>
    %3 = arith.maximumf %1, %2 : vector<32x16xf32>
    %4 = vector.extract_strided_slice %3 {offsets = [0, 0], sizes = [32, 15], strides = [1, 1]} : vector<32x16xf32> to vector<32x15xf32>
    %5 = vector.extract_strided_slice %3 {offsets = [0, 1], sizes = [32, 15], strides = [1, 1]} : vector<32x16xf32> to vector<32x15xf32>
    %6 = arith.maximumf %4, %5 : vector<32x15xf32>
    %7 = tpu.iota {dimensions = array<i32: 0>} : vector<15x8xi32>
    %8 = tpu.iota {dimensions = array<i32: 1>} : vector<15x8xi32>
    %c2_i32 = arith.constant 2 : i32
    %9 = vector.broadcast %c2_i32 : i32 to vector<15x8xi32>
    %10 = arith.muli %8, %9 : vector<15x8xi32>
    %11 = arith.cmpi eq, %7, %10 : vector<15x8xi32>
    %12 = arith.extui %11 : vector<15x8xi1> to vector<15x8xi32>
    %13 = arith.sitofp %12 : vector<15x8xi32> to vector<15x8xf32>
    %cst = arith.constant dense<0.000000e+00> : vector<32x8xf32>
    %14 = tpu.matmul %6, %13, %cst {dimension_numbers = #tpu.dot_dimension_numbers<[1], [0], [0], [1], [0, 0, 1, 1], [], []>} : vector<32x15xf32>, vector<15x8xf32>, vector<32x8xf32> -> vector<32x8xf32>
    %c0_1 = arith.constant 0 : index
    %c0_2 = arith.constant 0 : index
    %15 = vector.load %arg2[%c0_1, %c0_2] : memref<32x8xf32, #tpu.memory_space<vmem>>, vector<32x8xf32>
    tpu.vector_store %arg2[%c0_1, %c0_2], %14 {strides = array<i32>} : memref<32x8xf32, #tpu.memory_space<vmem>>, vector<32x8xf32>,
    return
  }
  func.func @transform_0(%arg0: i32) -> (i32, i32) {
    %c0_i32 = arith.constant 0 : i32
    %c0_i32_0 = arith.constant 0 : i32
    return %arg0, %c0_i32 : i32, i32
  }
  func.func @transform_1(%arg0: i32) -> (i32, i32) {
    %c0_i32 = arith.constant 0 : i32
    %c0_i32_0 = arith.constant 0 : i32
    return %arg0, %c0_i32 : i32, i32
  }
}

</mosaic_0001>

<llo_original>
// kernel: maxpool2d_pallas.1
$region0: #{maxpool2d_pallas.1}
  #allocation0 [shape = 'u32[]', space=smem, size = 0x4, offset = 0x4, fixed_abs, tag = 'smem constant byte address 0x4 - core index']
  #allocation1 [shape = 'u32[144,128]{1,0:T(1,128)}', space=vmem, size = 0x12000, scoped, tag = 'internal scratch']
  %s0 = inlined_call_operand.vmem [shape: f32[64,32], index: 0, kind: input, shape index: {}]
  %s1 = inlined_call_operand.hbm [shape: f32[64,8], index: 1, kind: output, shape index: {}]
  %s2 = sld [smem:[#allocation0]]
  $region37: #{maxpool2d_pallas.1} parent=0
    _
  %s4 = ssub.s32 1, %s2
  %s5 = scalar_select 0, %s4, %s2
  $region1: #{maxpool2d_pallas.1} parent=0
    #allocation2 [shape = 'u8[32768]{0}', space=vmem, size = 0x8000, scoped, tag = 'output window, operand 0']
    #allocation3 [shape = 's32[2]{0}', space=sflag, size = 0x8, scoped, tag = 'scoped memory for maxpool2d_pallas.1']
    %6 = vsyncpa [#allocation3], 0
    %s7 = scalar_lea.sflag [#allocation3], 1
    %8 = vsyncpa %s7, 0
    loop: start=0, step=1, limit=4
    $region2: #{maxpool2d_pallas.1} parent=1 // loop_pre_header
      _
    $region3: #{maxpool2d_pallas.1} parent=1 // loop_header
      %s10 = sphi 0, %s14
      %p11 = scmp.ge.s32.totalorder %s10, 4
      %s20 = sphi 0, %s22
      %s23 = sphi 0, %s20
      %s24 = sphi 0, %s23
      %s40 = sphi 0, %s24
      %s46 = sphi 0, %s48
      %s49 = sphi 0, %s46
      %s50 = sphi 0, %s49
      %s66 = sphi 0, %s50
    $region4: #{maxpool2d_pallas.1} parent=1 // loop_header_branch
      %13 = sbr.rel (%p11) target = $region8
    $region5: #{maxpool2d_pallas.1} parent=1 // loop_body
      %s15 = ssub.s32 %s10, 1
      %s16 = ssub.s32 %s10, 2
      %s17 = sadd.s32 %s10, 1
      %s18 = ssub.s32 %s10, %s17
      %p19 = scmp.eq.s32.totalorder %s18, 0
      %s21 = sadd.s32 %s20, 1
      %s22 = scalar_select %p19, %s20, %s21
      %p25 = pneg %p19
      %p26 = scmp.eq.s32.totalorder %s10, 1
      %p27 = por %p25, %p26
      %p28 = scmp.ne.s32.totalorder %s20, %s23
      %p29 = scmp.eq.s32.totalorder %s10, 0
      %p30 = por %p28, %p29
      %p31 = scmp.ne.s32.totalorder %s20, %s23
      %p32 = scmp.eq.s32.totalorder %s15, 1
      %p33 = por %p31, %p32
      %p34 = scmp.ne.s32.totalorder %s23, %s24
      %p35 = scmp.eq.s32.totalorder %s15, 0
      %p36 = por %p34, %p35
      %p37 = scmp.ne.s32.totalorder %s23, %s24
      %p38 = scmp.eq.s32.totalorder %s16, 1
      %p39 = por %p37, %p38
      %p41 = scmp.ne.s32.totalorder %s24, %s40
      %p42 = scmp.eq.s32.totalorder %s16, 0
      %p43 = por %p41, %p42
      %s44 = ssub.s32 %s10, %s17
      %p45 = scmp.eq.s32.totalorder %s44, 0
      %s47 = sadd.s32 %s46, 1
      %s48 = scalar_select %p45, %s46, %s47
      %p51 = pneg %p45
      %p52 = scmp.eq.s32.totalorder %s10, 1
      %p53 = por %p51, %p52
      %p54 = scmp.ne.s32.totalorder %s46, %s49
      %p55 = scmp.eq.s32.totalorder %s10, 0
      %p56 = por %p54, %p55
      %p57 = scmp.ne.s32.totalorder %s46, %s49
      %p58 = scmp.eq.s32.totalorder %s15, 1
      %p59 = por %p57, %p58
      %p60 = scmp.ne.s32.totalorder %s49, %s50
      %p61 = scmp.eq.s32.totalorder %s15, 0
      %p62 = por %p60, %p61
      %p63 = scmp.ne.s32.totalorder %s49, %s50
      %p64 = scmp.eq.s32.totalorder %s16, 1
      %p65 = por %p63, %p64
      %p67 = scmp.ne.s32.totalorder %s50, %s66
      %p68 = scmp.eq.s32.totalorder %s16, 0
      %p69 = por %p67, %p68
      %p70 = scmp.le.s32.totalorder 1, %s10
      %p71 = scmp.lt.s32.totalorder %s10, 3
      %p72 = pnand %p70, %p71
      %p73 = pneg %p72
      // Predicated region
      $region9: #{maxpool2d_pallas.1} parent=5 // pred_check
        _
      $region10: #{maxpool2d_pallas.1} parent=5 // pred_check_branch
        %75 = sbr.rel (%p72) target = $region12
      $region11: #{maxpool2d_pallas.1} parent=5 // pred_region
        %s76 = ssub.s32 %s10, 1
      $region12: #{maxpool2d_pallas.1} parent=5 // pred_fallthru
        _
      %p77 = scmp.lt.s32.totalorder %s10, 2
      // Predicated region
      $region13: #{maxpool2d_pallas.1} parent=5 // pred_check
        %p78 = pneg %p77
      $region14: #{maxpool2d_pallas.1} parent=5 // pred_check_branch
        %80 = sbr.rel (%p78) target = $region16
      $region15: #{maxpool2d_pallas.1} parent=5 // pred_region
        // Predicated region
        $region17: #{maxpool2d_pallas.1} parent=15 // pred_check
          %p81 = pneg %p30
        $region18: #{maxpool2d_pallas.1} parent=15 // pred_check_branch
          %83 = sbr.rel (%p81) target = $region20
        $region19: #{maxpool2d_pallas.1} parent=15 // pred_region
          %s84 = smul.u32 4, %s10
          %p85 = scmp.lt.s32.totalorder %s84, 7
          %s86 = scalar_select %p85, %s84, 7
          %s87 = smul.addr %s86, 8
          %s88 = scalar_lea.vmem %s0, %s87
          %s89 = smul.u32 4, %s10
        $region20: #{maxpool2d_pallas.1} parent=15 // pred_fallthru
          _
      $region16: #{maxpool2d_pallas.1} parent=5 // pred_fallthru
        _
      %p90 = scmp.le.s32.totalorder 1, %s10
      %p91 = scmp.lt.s32.totalorder %s10, 3
      %p92 = pnand %p90, %p91
      %p93 = pneg %p92
      // Predicated region
      $region21: #{maxpool2d_pallas.1} parent=5 // pred_check
        _
      $region22: #{maxpool2d_pallas.1} parent=5 // pred_check_branch
        %95 = sbr.rel (%p92) target = $region24
      $region23: #{maxpool2d_pallas.1} parent=5 // pred_region
        %s96 = ssub.s32 %s10, 1
        %s97 = smul.u32 4, %s15
        %p98 = scmp.lt.s32.totalorder %s97, 7
        %s99 = scalar_select %p98, %s97, 7
        %s100 = smul.addr %s99, 8
        %s101 = scalar_lea.vmem %s0, %s100
        %p102 = pneg %p36
        %p103 = pneg %p33
        %p104 = pneg %p62
        %p105 = pneg %p59
        %s106 = sand.u32 %s49, 1
        %s107 = scalar_lea.sflag [#allocation3], %s106
        %s108 = sand.u32 %s49, 1
        %s109 = smul.addr %s108, 32
        %s110 = scalar_lea.vmem [#allocation2], %s109
        %s111 = smul.u32 4, %s15
        %p112 = scmp.lt.s32.totalorder %s111, 7
        %s113 = scalar_select %p112, %s111, 7
        %s114 = smul.addr %s113, 8
        %s115 = scalar_lea.vmem %s0, %s114
        %s116 = smul.u32 4, %s15
        %s117 = smul.u32 4, %s15
        %v118 = vld [vmem:[%s115] sm:$0xff]
        %v119 = vld [vmem:[%s115 + $0x8] sm:$0xff]
        %v120 = vld [vmem:[%s115 + $0x10] sm:$0xff]
        %v121 = vld [vmem:[%s115 + $0x18] sm:$0xff]
        %126 = vrot.lane.b32.xlu0 %v118, 112
        %v127 = vpop.permute.xlu0 %126
        %128 = vrot.lane.b32.xlu0 %v119, 112
        %v129 = vpop.permute.xlu0 %128
        %130 = vrot.lane.b32.xlu0 %v120, 112
        %v131 = vpop.permute.xlu0 %130
        %132 = vrot.lane.b32.xlu0 %v121, 112
        %v133 = vpop.permute.xlu0 %132
        %v138 = vmax.f32 %v118, %v127
        %v139 = vmax.f32 %v119, %v129
        %v140 = vmax.f32 %v120, %v131
        %v141 = vmax.f32 %v121, %v133
        %146 = vrot.lane.b32.xlu0 %v138, 127
        %v147 = vpop.permute.xlu0 %146
        %148 = vrot.lane.b32.xlu0 %v139, 127
        %v149 = vpop.permute.xlu0 %148
        %150 = vrot.lane.b32.xlu0 %v140, 127
        %v151 = vpop.permute.xlu0 %150
        %152 = vrot.lane.b32.xlu0 %v141, 127
        %v153 = vpop.permute.xlu0 %152
        %v158 = vmax.f32 %v138, %v147
        %v159 = vmax.f32 %v139, %v149
        %v160 = vmax.f32 %v140, %v151
        %v161 = vmax.f32 %v141, %v153
        %v162 = vlaneseq
        %v163 = vshrl.u32 %v162, 7
        %v164 = vadd.s32 %v163, 8
        %v165 = vlaneseq
        %v166 = vand.u32 %v165, 127
        %v167 = vmul.u32 %v166, 2
        %vm168 = vcmp.eq.s32.totalorder %v163, %v167
        %vm169 = vcmp.eq.s32.totalorder %v164, %v167
        %v170 = vsel %vm168, 1, 0
        %v171 = vsel %vm169, 1, 0
        %v172 = vcvt.s32.f32 %v170
        %v173 = vcvt.s32.f32 %v171
        %vm174 = vcmask 121856
        %v176 = vsel %vm174, %v158, 0
        %v179 = vsel %vm174, %v159, 0
        %v182 = vsel %vm174, %v160, 0
        %v185 = vsel %vm174, %v161, 0
        %vm187 = vcmask 1046528
        %v189 = vsel %vm187, %v173, 0
        %191 = vmatprep.subr.mxu0 0.0
        %192 = vmatpush1.msra.mxu0 0.0
        %193 = vmatprep.subr.mxu0 0.0
        %194 = vmatpush1.msra.mxu0 0.0
        %195 = vmatprep.subr.mxu0 0.0
        %196 = vmatpush1.msra.mxu0 0.0
        %197 = vmatprep.subr.mxu0 0.0
        %198 = vmatpush1.msra.mxu0 0.0
        %199 = vmatprep.subr.mxu0 0.0
        %200 = vmatpush1.msra.mxu0 0.0
        %201 = vmatprep.subr.mxu0 0.0
        %202 = vmatpush1.msra.mxu0 0.0
        %203 = vmatprep.subr.mxu0 0.0
        %204 = vmatpush1.msra.mxu0 0.0
        %205 = vmatprep.subr.mxu0 0.0
        %206 = vmatpush1.msra.mxu0 0.0
        %207 = vmatprep.subr.mxu0 0.0
        %208 = vmatpush1.msra.mxu0 0.0
        %209 = vmatprep.subr.mxu0 0.0
        %210 = vmatpush1.msra.mxu0 0.0
        %211 = vmatprep.subr.mxu0 0.0
        %212 = vmatpush1.msra.mxu0 0.0
        %213 = vmatprep.subr.mxu0 0.0
        %214 = vmatpush1.msra.mxu0 0.0
        %215 = vmatprep.subr.mxu0 0.0
        %216 = vmatpush1.msra.mxu0 0.0
        %217 = vmatprep.subr.mxu0 0.0
        %218 = vmatpush1.msra.mxu0 0.0
        %219 = vmatprep.subr.mxu0 0.0
        %220 = vmatpush1.msra.mxu0 %v189
        %221 = vmatprep.subr.mxu0 0.0
        %222 = vmatpush1.msra.mxu0 %v172
        %223 = vmatprep.subr.mxu0 0.0
        %224 = vmatpush2.msra.mxu0 0.0
        %225 = vmatprep.subr.mxu0 0.0
        %226 = vmatpush2.msra.mxu0 0.0
        %227 = vmatprep.subr.mxu0 0.0
        %228 = vmatpush2.msra.mxu0 0.0
        %229 = vmatprep.subr.mxu0 0.0
        %230 = vmatpush2.msra.mxu0 0.0
        %231 = vmatprep.subr.mxu0 0.0
        %232 = vmatpush2.msra.mxu0 0.0
        %233 = vmatprep.subr.mxu0 0.0
        %234 = vmatpush2.msra.mxu0 0.0
        %235 = vmatprep.subr.mxu0 0.0
        %236 = vmatpush2.msra.mxu0 0.0
        %237 = vmatprep.subr.mxu0 0.0
        %238 = vmatpush2.msra.mxu0 0.0
        %239 = vmatprep.subr.mxu0 0.0
        %240 = vmatpush2.msra.mxu0 0.0
        %241 = vmatprep.subr.mxu0 0.0
        %242 = vmatpush2.msra.mxu0 0.0
        %243 = vmatprep.subr.mxu0 0.0
        %244 = vmatpush2.msra.mxu0 0.0
        %245 = vmatprep.subr.mxu0 0.0
        %246 = vmatpush2.msra.mxu0 0.0
        %247 = vmatprep.subr.mxu0 0.0
        %248 = vmatpush2.msra.mxu0 0.0
        %249 = vmatprep.subr.mxu0 0.0
        %250 = vmatpush2.msra.mxu0 0.0
        %251 = vmatprep.subr.mxu0 0.0
        %252 = vmatpush2.msra.mxu0 0.0
        %253 = vmatprep.subr.mxu0 0.0
        %254 = vmatpush2.msra.mxu0 0.0
        %255 = vmatprep.mubr.f32.mxu0 0.0
        %256 = vmatmul.mubr.f32.gmra.mxu0 %v176
        %v257 = vpop.f32.mrf.mxu0
        %v258 = vadd.f32 0.0, %v257
        %v259 = vpop.f32.mrf.mxu0
        %260 = vmatprep.mubr.f32.mxu0 0.0
        %261 = vmatmul.mubr.f32.gmra.mxu0 %v179
        %v262 = vpop.f32.mrf.mxu0
        %v263 = vadd.f32 0.0, %v262
        %v264 = vpop.f32.mrf.mxu0
        %265 = vmatprep.mubr.f32.mxu0 0.0
        %266 = vmatmul.mubr.f32.gmra.mxu0 %v182
        %v267 = vpop.f32.mrf.mxu0
        %v268 = vadd.f32 0.0, %v267
        %v269 = vpop.f32.mrf.mxu0
        %270 = vmatprep.mubr.f32.mxu0 0.0
        %271 = vmatmul.mubr.f32.gmra.mxu0 %v185
        %v272 = vpop.f32.mrf.mxu0
        %v273 = vadd.f32 0.0, %v272
        %v274 = vpop.f32.mrf.mxu0
        %275 = vdwg.mxu0
        %vm276 = vcmask 64512
        %277 = vst.msk [vmem:[%s110] sm:$0xff] %vm276, %v258
        %278 = vst.msk [vmem:[%s110 + $0x8] sm:$0xff] %vm276, %v263
        %279 = vst.msk [vmem:[%s110 + $0x10] sm:$0xff] %vm276, %v268
        %280 = vst.msk [vmem:[%s110 + $0x18] sm:$0xff] %vm276, %v273
        %s281 = sand.u32 %s49, 1
        %s282 = scalar_lea.sflag [#allocation3], %s281
        %s283 = sand.u32 %s49, 1
        %s284 = smul.addr %s283, 32
        %s285 = scalar_lea.vmem [#allocation2], %s284
        // Predicated region
        $region25: #{maxpool2d_pallas.1} parent=23 // pred_check
          %p286 = pneg %p59
        $region26: #{maxpool2d_pallas.1} parent=23 // pred_check_branch
          %288 = sbr.rel (%p286) target = $region28
        $region27: #{maxpool2d_pallas.1} parent=23 // pred_region
          %s289 = smul.u32 4, %s15
          %s291 = ssub.s32 512, 512
          %292 = vsyncadd %s282, %s291
          %s293 = smul.addr %s289, 128
          %s294 = scalar_lea.hbm %s1, %s293
          %s295 = sshll.u32 %s285, 4
          %s296 = int_to_ptr.vmem [resolvable:$true] %s295
          %301 = dma.vmem_to_hbm [thread:$0]  %s296, 512, %s294, %s282, 128, 128, 8
        $region28: #{maxpool2d_pallas.1} parent=23 // pred_fallthru
          _
      $region24: #{maxpool2d_pallas.1} parent=5 // pred_fallthru
        _
      %p302 = scmp.le.s32.totalorder 2, %s10
      // Predicated region
      $region29: #{maxpool2d_pallas.1} parent=5 // pred_check
        %p303 = pneg %p302
      $region30: #{maxpool2d_pallas.1} parent=5 // pred_check_branch
        %305 = sbr.rel (%p303) target = $region32
      $region31: #{maxpool2d_pallas.1} parent=5 // pred_region
        %s306 = ssub.s32 %s10, 2
        // Predicated region
        $region33: #{maxpool2d_pallas.1} parent=31 // pred_check
          %p307 = pneg %p65
        $region34: #{maxpool2d_pallas.1} parent=31 // pred_check_branch
          %309 = sbr.rel (%p307) target = $region36
        $region35: #{maxpool2d_pallas.1} parent=31 // pred_region
          %s310 = sand.u32 %s50, 1
          %s311 = scalar_lea.sflag [#allocation3], %s310
          %s312 = sand.u32 %s50, 1
          %s313 = smul.addr %s312, 32
          %s314 = scalar_lea.vmem [#allocation2], %s313
          %315 = dma.done %s311, 512
        $region36: #{maxpool2d_pallas.1} parent=31 // pred_fallthru
          _
      $region32: #{maxpool2d_pallas.1} parent=5 // pred_fallthru
        _
    $region6: #{maxpool2d_pallas.1} parent=1 // loop_footer
      %s14 = sadd.s32 1, %s10
    $region7: #{maxpool2d_pallas.1} parent=1 // loop_footer_branch
      %9 = sbr.rel target = $region3
    $region8: #{maxpool2d_pallas.1} parent=1 // loop_exit
      _
    %316 = vsyncpa [#allocation3], 1
    %s317 = scalar_lea.sflag [#allocation3], 1
    %318 = vsyncpa %s317, 1

</llo_original>
